<compile_context>
chip_gen: v5e
topology: v5e:2x2
jax: 0.10.0
libtpu: 0.0.40
codegen_flags: <defaults>
</compile_context>

<pallas_src>
import functools

import jax
import jax.numpy as jnp
from jax.experimental import pallas as pl
from jax.experimental.pallas import tpu as pltpu

_LANES = 128


def _cm_kernel(x_ref, t_ref, out_ref, *, nlabels, out_rows):
    """Accumulate per-lane confusion-matrix partial counts for one block.

    x_ref   : (C, R, 128) logits (C == nlabels)
    t_ref   : (R, 128)    int32 labels; padded positions hold -1
    out_ref : (out_rows, 128) int32, resident across the row-block axis:
                rows [0, L)   : count(pred == l & target == l)   (TP)
                rows [L, 2L)  : count(pred == l)                 (pred hist)
                rows [2L, 3L) : count(target == l)               (target hist)
    """
    j = pl.program_id(1)

    @pl.when(j == 0)
    def _init():
        out_ref[...] = jnp.zeros_like(out_ref)

    tgt = t_ref[...]                       # (R, 128) int32
    valid = tgt >= 0                       # padded tail was filled with -1

    if nlabels == 1:
        x0 = x_ref[0]
        if x0.dtype != jnp.float32:
            x0 = x0.astype(jnp.float32)
        # torch: pred = sigmoid(x).gt(0.5)  <=>  x > 0 ; counting uses pred.eq(1)
        pos_pred = (x0 > 0.0) & valid
        pred_mask = lambda l: pos_pred
    else:
        best = x_ref[0]
        if best.dtype != jnp.float32:
            best = best.astype(jnp.float32)
        pred = jnp.zeros(best.shape, jnp.int32)
        for c in range(1, nlabels):        # unrolled channel argmax (first-occurrence)
            cur = x_ref[c]
            if cur.dtype != jnp.float32:
                cur = cur.astype(jnp.float32)
            better = cur > best
            pred = jnp.where(better, c, pred)
            best = jnp.where(better, cur, best)
        pred = jnp.where(valid, pred, -1)  # padded positions never match a label
        pred_mask = lambda l: pred == l

    tp_rows, ph_rows, th_rows = [], [], []
    for l in range(nlabels):
        p = pred_mask(l)
        t = tgt == l
        tp_rows.append(jnp.sum(jnp.where(p & t, 1, 0), axis=0, keepdims=True))
        ph_rows.append(jnp.sum(jnp.where(p, 1, 0), axis=0, keepdims=True))
        th_rows.append(jnp.sum(jnp.where(t, 1, 0), axis=0, keepdims=True))

    parts = tp_rows + ph_rows + th_rows
    pad = out_rows - 3 * nlabels
    if pad:
        parts.append(jnp.zeros((pad, _LANES), jnp.int32))
    out_ref[...] += jnp.concatenate(parts, axis=0)


def confusion_matrix(logits_nchw, target_nhw, nlabels=5, *, max_rows_per_block=None):
    """Pallas equivalent of ConfusionMatrix(nlabels).forward(input, target)."""
    N, C, H, W = logits_nchw.shape
    assert C == nlabels, "channel dim must equal nlabels"
    HW = H * W
    total = N * HW

    x = logits_nchw.reshape(N, C, HW)
    t = target_nhw.reshape(N, HW)
    if t.dtype != jnp.int32:
        t = t.astype(jnp.int32)

    rows = -(-HW // _LANES)

    # Pick the row-block size so double-buffered input blocks stay ~<= 8 MiB
    # (safe inside every generation's scoped-VMEM default, incl. v5e / v7x).
    itemsize = jnp.dtype(logits_nchw.dtype).itemsize
    bytes_per_row = (C * itemsize + 4) * _LANES
    if max_rows_per_block is None:
        budget = 8 * 1024 * 1024
        max_rows_per_block = max(8, min(4096, (budget // (2 * bytes_per_row)) // 8 * 8))

    if rows <= max_rows_per_block:
        n_blk, r_blk = 1, rows
    else:
        n_blk = -(-rows // max_rows_per_block)
        per = -(-rows // n_blk)
        r_blk = -(-per // 8) * 8           # round up to sublane multiple

    rows_pad = n_blk * r_blk
    hw_pad = rows_pad * _LANES
    if hw_pad != HW:                       # only copies when misaligned
        x = jnp.pad(x, ((0, 0), (0, 0), (0, hw_pad - HW)))
        t = jnp.pad(t, ((0, 0), (0, hw_pad - HW)), constant_values=-1)
    x = x.reshape(N, C, rows_pad, _LANES)
    t = t.reshape(N, rows_pad, _LANES)

    out_rows = max(8, -(-3 * nlabels // 8) * 8)
    kernel = functools.partial(_cm_kernel, nlabels=nlabels, out_rows=out_rows)

    partials = pl.pallas_call(
        kernel,
        out_shape=jax.ShapeDtypeStruct((N, out_rows, _LANES), jnp.int32),
        grid_spec=pltpu.PrefetchScalarGridSpec(
            num_scalar_prefetch=0,
            grid=(N, n_blk),
            in_specs=[
                pl.BlockSpec((None, C, r_blk, _LANES), lambda n, j: (n, 0, j, 0)),
                pl.BlockSpec((None, r_blk, _LANES), lambda n, j: (n, j, 0)),
            ],
            out_specs=pl.BlockSpec((None, out_rows, _LANES), lambda n, j: (n, 0, 0)),
        ),
        compiler_params=pltpu.CompilerParams(
            dimension_semantics=("parallel", "arbitrary")),
    )(x, t)

    # Tiny exact-integer epilogue: derive FP/FN/TN from the histograms.
    s = jnp.sum(partials, axis=(0, 2))     # (out_rows,) int32
    tp = s[:nlabels]
    ph = s[nlabels:2 * nlabels]
    th = s[2 * nlabels:3 * nlabels]
    fp = ph - tp
    fn = th - tp
    tn = total - tp - fp - fn
    return jnp.stack([tp, tn, fp, fn], axis=1).astype(jnp.float32)


def _reference(x, target, nlabels):
    """Pure-JAX mirror of the PyTorch ConfusionMatrix.forward (both paths)."""
    if nlabels == 1:
        pred = (jax.nn.sigmoid(x[:, 0]) > 0.5).astype(jnp.int32)
    else:
        pred = jnp.argmax(x, axis=1)
    rows = []
    for l in range(nlabels):
        p = (pred == 1) if nlabels == 1 else (pred == l)
        lab = target == l
        cmv = p.astype(jnp.int32) * 2 - lab.astype(jnp.int32)
        tp = jnp.sum(cmv == 1)
        tn = jnp.sum(cmv == 0)
        fp = jnp.sum(cmv == 2)
        fn = jnp.sum(cmv == -1)
        rows.append(jnp.stack([tp, tn, fp, fn]).astype(jnp.float32))
    return jnp.stack(rows)


if __name__ == "__main__":
    key = jax.random.PRNGKey(0)
    k1, k2, k3, k4, k5, k6 = jax.random.split(key, 6)

    # multi-class path (default nlabels=5)
    nlabels, N, H, W = 5, 2, 16, 16
    x = jax.random.normal(k1, (N, nlabels, H, W), dtype=jnp.float32)
    tgt = jax.random.randint(k2, (N, H, W), 0, nlabels, dtype=jnp.int32)
    cm = jax.block_until_ready(confusion_matrix(x, tgt, nlabels=nlabels))
    ref = _reference(x, tgt, nlabels)
    assert cm.shape == (nlabels, 4) and cm.dtype == jnp.float32
    assert bool(jnp.all(cm == ref)), (cm, ref)

    # unaligned spatial size (exercises the padded / masked tail)
    H2, W2 = 9, 13
    x2 = jax.random.normal(k3, (N, nlabels, H2, W2), dtype=jnp.float32)
    tgt2 = jax.random.randint(k4, (N, H2, W2), 0, nlabels, dtype=jnp.int32)
    cm2 = jax.block_until_ready(confusion_matrix(x2, tgt2, nlabels=nlabels))
    assert bool(jnp.all(cm2 == _reference(x2, tgt2, nlabels))), cm2

    # binary (sigmoid-threshold) path, literal torch semantics
    x1 = jax.random.normal(k5, (N, 1, H, W), dtype=jnp.float32)
    tgt1 = jax.random.randint(k6, (N, H, W), 0, 2, dtype=jnp.int32)
    cm1 = jax.block_until_ready(confusion_matrix(x1, tgt1, nlabels=1))
    assert bool(jnp.all(cm1 == _reference(x1, tgt1, 1))), cm1

    print("KERNEL_OK")
</pallas_src>

<mosaic_0001>
module attributes {stable_mosaic.version = 11 : i64} {
  func.func @_cm_kernel(%arg0: i32, %arg1: i32, %arg2: memref<1x5x2x128xf32, #tpu.memory_space<vmem>>, %arg3: memref<1x2x128xi32, #tpu.memory_space<vmem>>, %arg4: memref<1x16x128xi32, #tpu.memory_space<vmem>>) attributes {dimension_semantics = [#tpu.dimension_semantics<parallel>, #tpu.dimension_semantics<arbitrary>], iteration_bounds = array<i64: 2, 1>, scalar_prefetch = 0 : i64, scratch_operands = 0 : i64, tpu.core_type = #tpu.core_type<tc>, window_params = [{transform_indices = @transform_0, window_bounds = array<i64: 1, 5, 2, 128>}, {transform_indices = @transform_1, window_bounds = array<i64: 1, 2, 128>}, {transform_indices = @transform_2, window_bounds = array<i64: 1, 16, 128>}]} {
    %c0_i32 = arith.constant 0 : i32
    %0 = arith.cmpi eq, %arg1, %c0_i32 : i32
    %1 = arith.extui %0 : i1 to i32
    %c0_i32_0 = arith.constant 0 : i32
    %2 = arith.cmpi ne, %1, %c0_i32_0 : i32
    scf.if %2 {
      %c0_i32_82 = arith.constant 0 : i32
      %143 = vector.broadcast %c0_i32_82 : i32 to vector<16x128xi32>
      %c0_83 = arith.constant 0 : index
      %c0_84 = arith.constant 0 : index
      %c0_85 = arith.constant 0 : index
      %144 = vector.load %arg4[%c0_83, %c0_84, %c0_85] : memref<1x16x128xi32, #tpu.memory_space<vmem>>, vector<1x16x128xi32>
      %145 = vector.shape_cast %144 : vector<1x16x128xi32> to vector<16x128xi32>
      %146 = vector.shape_cast %143 : vector<16x128xi32> to vector<1x16x128xi32>
      tpu.vector_store %arg4[%c0_83, %c0_84, %c0_85], %146 {strides = array<i32>} : memref<1x16x128xi32, #tpu.memory_space<vmem>>, vector<1x16x128xi32>,
    } else {
    }
    %c0 = arith.constant 0 : index
    %c0_1 = arith.constant 0 : index
    %c0_2 = arith.constant 0 : index
    %3 = vector.load %arg3[%c0, %c0_1, %c0_2] : memref<1x2x128xi32, #tpu.memory_space<vmem>>, vector<1x2x128xi32>
    %4 = vector.shape_cast %3 : vector<1x2x128xi32> to vector<2x128xi32>
    %c0_i32_3 = arith.constant 0 : i32
    %5 = vector.broadcast %c0_i32_3 : i32 to vector<2x128xi32>
    %6 = arith.cmpi sge, %4, %5 : vector<2x128xi32>
    %c0_4 = arith.constant 0 : index
    %c0_5 = arith.constant 0 : index
    %c0_6 = arith.constant 0 : index
    %c0_7 = arith.constant 0 : index
    %7 = vector.load %arg2[%c0_4, %c0_5, %c0_6, %c0_7] : memref<1x5x2x128xf32, #tpu.memory_space<vmem>>, vector<1x1x2x128xf32>
    %8 = vector.shape_cast %7 : vector<1x1x2x128xf32> to vector<2x128xf32>
    %c0_i32_8 = arith.constant 0 : i32
    %9 = vector.broadcast %c0_i32_8 : i32 to vector<2x128xi32>
    %c0_9 = arith.constant 0 : index
    %c1 = arith.constant 1 : index
    %c0_10 = arith.constant 0 : index
    %c0_11 = arith.constant 0 : index
    %10 = vector.load %arg2[%c0_9, %c1, %c0_10, %c0_11] : memref<1x5x2x128xf32, #tpu.memory_space<vmem>>, vector<1x1x2x128xf32>
    %11 = vector.shape_cast %10 : vector<1x1x2x128xf32> to vector<2x128xf32>
    %12 = arith.cmpf ogt, %11, %8 : vector<2x128xf32>
    %c1_i32 = arith.constant 1 : i32
    %13 = vector.broadcast %c1_i32 : i32 to vector<2x128xi32>
    %14 = arith.select %12, %13, %9 : vector<2x128xi1>, vector<2x128xi32>
    %15 = arith.select %12, %11, %8 : vector<2x128xi1>, vector<2x128xf32>
    %c0_12 = arith.constant 0 : index
    %c2 = arith.constant 2 : index
    %c0_13 = arith.constant 0 : index
    %c0_14 = arith.constant 0 : index
    %16 = vector.load %arg2[%c0_12, %c2, %c0_13, %c0_14] : memref<1x5x2x128xf32, #tpu.memory_space<vmem>>, vector<1x1x2x128xf32>
    %17 = vector.shape_cast %16 : vector<1x1x2x128xf32> to vector<2x128xf32>
    %18 = arith.cmpf ogt, %17, %15 : vector<2x128xf32>
    %c2_i32 = arith.constant 2 : i32
    %19 = vector.broadcast %c2_i32 : i32 to vector<2x128xi32>
    %20 = arith.select %18, %19, %14 : vector<2x128xi1>, vector<2x128xi32>
    %21 = arith.select %18, %17, %15 : vector<2x128xi1>, vector<2x128xf32>
    %c0_15 = arith.constant 0 : index
    %c3 = arith.constant 3 : index
    %c0_16 = arith.constant 0 : index
    %c0_17 = arith.constant 0 : index
    %22 = vector.load %arg2[%c0_15, %c3, %c0_16, %c0_17] : memref<1x5x2x128xf32, #tpu.memory_space<vmem>>, vector<1x1x2x128xf32>
    %23 = vector.shape_cast %22 : vector<1x1x2x128xf32> to vector<2x128xf32>
    %24 = arith.cmpf ogt, %23, %21 : vector<2x128xf32>
    %c3_i32 = arith.constant 3 : i32
    %25 = vector.broadcast %c3_i32 : i32 to vector<2x128xi32>
    %26 = arith.select %24, %25, %20 : vector<2x128xi1>, vector<2x128xi32>
    %27 = arith.select %24, %23, %21 : vector<2x128xi1>, vector<2x128xf32>
    %c0_18 = arith.constant 0 : index
    %c4 = arith.constant 4 : index
    %c0_19 = arith.constant 0 : index
    %c0_20 = arith.constant 0 : index
    %28 = vector.load %arg2[%c0_18, %c4, %c0_19, %c0_20] : memref<1x5x2x128xf32, #tpu.memory_space<vmem>>, vector<1x1x2x128xf32>
    %29 = vector.shape_cast %28 : vector<1x1x2x128xf32> to vector<2x128xf32>
    %30 = arith.cmpf ogt, %29, %27 : vector<2x128xf32>
    %c4_i32 = arith.constant 4 : i32
    %31 = vector.broadcast %c4_i32 : i32 to vector<2x128xi32>
    %32 = arith.select %30, %31, %26 : vector<2x128xi1>, vector<2x128xi32>
    %c-1_i32 = arith.constant -1 : i32
    %33 = vector.broadcast %c-1_i32 : i32 to vector<2x128xi32>
    %34 = arith.select %6, %32, %33 : vector<2x128xi1>, vector<2x128xi32>
    %c0_i32_21 = arith.constant 0 : i32
    %35 = vector.broadcast %c0_i32_21 : i32 to vector<2x128xi32>
    %36 = arith.cmpi eq, %34, %35 : vector<2x128xi32>
    %c0_i32_22 = arith.constant 0 : i32
    %37 = vector.broadcast %c0_i32_22 : i32 to vector<2x128xi32>
    %38 = arith.cmpi eq, %4, %37 : vector<2x128xi32>
    %39 = arith.andi %36, %38 : vector<2x128xi1>
    %c1_i32_23 = arith.constant 1 : i32
    %c0_i32_24 = arith.constant 0 : i32
    %40 = vector.broadcast %c1_i32_23 : i32 to vector<2x128xi32>
    %41 = vector.broadcast %c0_i32_24 : i32 to vector<2x128xi32>
    %42 = arith.select %39, %40, %41 : vector<2x128xi1>, vector<2x128xi32>
    %cst = arith.constant dense<0> : vector<128xi32>
    %43 = vector.multi_reduction <add>, %42, %cst [0] : vector<2x128xi32> to vector<128xi32>
    %44 = vector.shape_cast %43 : vector<128xi32> to vector<1x128xi32>
    %c1_i32_25 = arith.constant 1 : i32
    %c0_i32_26 = arith.constant 0 : i32
    %45 = vector.broadcast %c1_i32_25 : i32 to vector<2x128xi32>
    %46 = vector.broadcast %c0_i32_26 : i32 to vector<2x128xi32>
    %47 = arith.select %36, %45, %46 : vector<2x128xi1>, vector<2x128xi32>
    %cst_27 = arith.constant dense<0> : vector<128xi32>
    %48 = vector.multi_reduction <add>, %47, %cst_27 [0] : vector<2x128xi32> to vector<128xi32>
    %49 = vector.shape_cast %48 : vector<128xi32> to vector<1x128xi32>
    %c1_i32_28 = arith.constant 1 : i32
    %c0_i32_29 = arith.constant 0 : i32
    %50 = vector.broadcast %c1_i32_28 : i32 to vector<2x128xi32>
    %51 = vector.broadcast %c0_i32_29 : i32 to vector<2x128xi32>
    %52 = arith.select %38, %50, %51 : vector<2x128xi1>, vector<2x128xi32>
    %cst_30 = arith.constant dense<0> : vector<128xi32>
    %53 = vector.multi_reduction <add>, %52, %cst_30 [0] : vector<2x128xi32> to vector<128xi32>
    %54 = vector.shape_cast %53 : vector<128xi32> to vector<1x128xi32>
    %c1_i32_31 = arith.constant 1 : i32
    %55 = vector.broadcast %c1_i32_31 : i32 to vector<2x128xi32>
    %56 = arith.cmpi eq, %34, %55 : vector<2x128xi32>
    %c1_i32_32 = arith.constant 1 : i32
    %57 = vector.broadcast %c1_i32_32 : i32 to vector<2x128xi32>
    %58 = arith.cmpi eq, %4, %57 : vector<2x128xi32>
    %59 = arith.andi %56, %58 : vector<2x128xi1>
    %c1_i32_33 = arith.constant 1 : i32
    %c0_i32_34 = arith.constant 0 : i32
    %60 = vector.broadcast %c1_i32_33 : i32 to vector<2x128xi32>
    %61 = vector.broadcast %c0_i32_34 : i32 to vector<2x128xi32>
    %62 = arith.select %59, %60, %61 : vector<2x128xi1>, vector<2x128xi32>
    %cst_35 = arith.constant dense<0> : vector<128xi32>
    %63 = vector.multi_reduction <add>, %62, %cst_35 [0] : vector<2x128xi32> to vector<128xi32>
    %64 = vector.shape_cast %63 : vector<128xi32> to vector<1x128xi32>
    %c1_i32_36 = arith.constant 1 : i32
    %c0_i32_37 = arith.constant 0 : i32
    %65 = vector.broadcast %c1_i32_36 : i32 to vector<2x128xi32>
    %66 = vector.broadcast %c0_i32_37 : i32 to vector<2x128xi32>
    %67 = arith.select %56, %65, %66 : vector<2x128xi1>, vector<2x128xi32>
    %cst_38 = arith.constant dense<0> : vector<128xi32>
    %68 = vector.multi_reduction <add>, %67, %cst_38 [0] : vector<2x128xi32> to vector<128xi32>
    %69 = vector.shape_cast %68 : vector<128xi32> to vector<1x128xi32>
    %c1_i32_39 = arith.constant 1 : i32
    %c0_i32_40 = arith.constant 0 : i32
    %70 = vector.broadcast %c1_i32_39 : i32 to vector<2x128xi32>
    %71 = vector.broadcast %c0_i32_40 : i32 to vector<2x128xi32>
    %72 = arith.select %58, %70, %71 : vector<2x128xi1>, vector<2x128xi32>
    %cst_41 = arith.constant dense<0> : vector<128xi32>
    %73 = vector.multi_reduction <add>, %72, %cst_41 [0] : vector<2x128xi32> to vector<128xi32>
    %74 = vector.shape_cast %73 : vector<128xi32> to vector<1x128xi32>
    %c2_i32_42 = arith.constant 2 : i32
    %75 = vector.broadcast %c2_i32_42 : i32 to vector<2x128xi32>
    %76 = arith.cmpi eq, %34, %75 : vector<2x128xi32>
    %c2_i32_43 = arith.constant 2 : i32
    %77 = vector.broadcast %c2_i32_43 : i32 to vector<2x128xi32>
    %78 = arith.cmpi eq, %4, %77 : vector<2x128xi32>
    %79 = arith.andi %76, %78 : vector<2x128xi1>
    %c1_i32_44 = arith.constant 1 : i32
    %c0_i32_45 = arith.constant 0 : i32
    %80 = vector.broadcast %c1_i32_44 : i32 to vector<2x128xi32>
    %81 = vector.broadcast %c0_i32_45 : i32 to vector<2x128xi32>
    %82 = arith.select %79, %80, %81 : vector<2x128xi1>, vector<2x128xi32>
    %cst_46 = arith.constant dense<0> : vector<128xi32>
    %83 = vector.multi_reduction <add>, %82, %cst_46 [0] : vector<2x128xi32> to vector<128xi32>
    %84 = vector.shape_cast %83 : vector<128xi32> to vector<1x128xi32>
    %c1_i32_47 = arith.constant 1 : i32
    %c0_i32_48 = arith.constant 0 : i32
    %85 = vector.broadcast %c1_i32_47 : i32 to vector<2x128xi32>
    %86 = vector.broadcast %c0_i32_48 : i32 to vector<2x128xi32>
    %87 = arith.select %76, %85, %86 : vector<2x128xi1>, vector<2x128xi32>
    %cst_49 = arith.constant dense<0> : vector<128xi32>
    %88 = vector.multi_reduction <add>, %87, %cst_49 [0] : vector<2x128xi32> to vector<128xi32>
    %89 = vector.shape_cast %88 : vector<128xi32> to vector<1x128xi32>
    %c1_i32_50 = arith.constant 1 : i32
    %c0_i32_51 = arith.constant 0 : i32
    %90 = vector.broadcast %c1_i32_50 : i32 to vector<2x128xi32>
    %91 = vector.broadcast %c0_i32_51 : i32 to vector<2x128xi32>
    %92 = arith.select %78, %90, %91 : vector<2x128xi1>, vector<2x128xi32>
    %cst_52 = arith.constant dense<0> : vector<128xi32>
    %93 = vector.multi_reduction <add>, %92, %cst_52 [0] : vector<2x128xi32> to vector<128xi32>
    %94 = vector.shape_cast %93 : vector<128xi32> to vector<1x128xi32>
    %c3_i32_53 = arith.constant 3 : i32
    %95 = vector.broadcast %c3_i32_53 : i32 to vector<2x128xi32>
    %96 = arith.cmpi eq, %34, %95 : vector<2x128xi32>
    %c3_i32_54 = arith.constant 3 : i32
    %97 = vector.broadcast %c3_i32_54 : i32 to vector<2x128xi32>
    %98 = arith.cmpi eq, %4, %97 : vector<2x128xi32>
    %99 = arith.andi %96, %98 : vector<2x128xi1>
    %c1_i32_55 = arith.constant 1 : i32
    %c0_i32_56 = arith.constant 0 : i32
    %100 = vector.broadcast %c1_i32_55 : i32 to vector<2x128xi32>
    %101 = vector.broadcast %c0_i32_56 : i32 to vector<2x128xi32>
    %102 = arith.select %99, %100, %101 : vector<2x128xi1>, vector<2x128xi32>
    %cst_57 = arith.constant dense<0> : vector<128xi32>
    %103 = vector.multi_reduction <add>, %102, %cst_57 [0] : vector<2x128xi32> to vector<128xi32>
    %104 = vector.shape_cast %103 : vector<128xi32> to vector<1x128xi32>
    %c1_i32_58 = arith.constant 1 : i32
    %c0_i32_59 = arith.constant 0 : i32
    %105 = vector.broadcast %c1_i32_58 : i32 to vector<2x128xi32>
    %106 = vector.broadcast %c0_i32_59 : i32 to vector<2x128xi32>
    %107 = arith.select %96, %105, %106 : vector<2x128xi1>, vector<2x128xi32>
    %cst_60 = arith.constant dense<0> : vector<128xi32>
    %108 = vector.multi_reduction <add>, %107, %cst_60 [0] : vector<2x128xi32> to vector<128xi32>
    %109 = vector.shape_cast %108 : vector<128xi32> to vector<1x128xi32>
    %c1_i32_61 = arith.constant 1 : i32
    %c0_i32_62 = arith.constant 0 : i32
    %110 = vector.broadcast %c1_i32_61 : i32 to vector<2x128xi32>
    %111 = vector.broadcast %c0_i32_62 : i32 to vector<2x128xi32>
    %112 = arith.select %98, %110, %111 : vector<2x128xi1>, vector<2x128xi32>
    %cst_63 = arith.constant dense<0> : vector<128xi32>
    %113 = vector.multi_reduction <add>, %112, %cst_63 [0] : vector<2x128xi32> to vector<128xi32>
    %114 = vector.shape_cast %113 : vector<128xi32> to vector<1x128xi32>
    %c4_i32_64 = arith.constant 4 : i32
    %115 = vector.broadcast %c4_i32_64 : i32 to vector<2x128xi32>
    %116 = arith.cmpi eq, %34, %115 : vector<2x128xi32>
    %c4_i32_65 = arith.constant 4 : i32
    %117 = vector.broadcast %c4_i32_65 : i32 to vector<2x128xi32>
    %118 = arith.cmpi eq, %4, %117 : vector<2x128xi32>
    %119 = arith.andi %116, %118 : vector<2x128xi1>
    %c1_i32_66 = arith.constant 1 : i32
    %c0_i32_67 = arith.constant 0 : i32
    %120 = vector.broadcast %c1_i32_66 : i32 to vector<2x128xi32>
    %121 = vector.broadcast %c0_i32_67 : i32 to vector<2x128xi32>
    %122 = arith.select %119, %120, %121 : vector<2x128xi1>, vector<2x128xi32>
    %cst_68 = arith.constant dense<0> : vector<128xi32>
    %123 = vector.multi_reduction <add>, %122, %cst_68 [0] : vector<2x128xi32> to vector<128xi32>
    %124 = vector.shape_cast %123 : vector<128xi32> to vector<1x128xi32>
    %c1_i32_69 = arith.constant 1 : i32
    %c0_i32_70 = arith.constant 0 : i32
    %125 = vector.broadcast %c1_i32_69 : i32 to vector<2x128xi32>
    %126 = vector.broadcast %c0_i32_70 : i32 to vector<2x128xi32>
    %127 = arith.select %116, %125, %126 : vector<2x128xi1>, vector<2x128xi32>
    %cst_71 = arith.constant dense<0> : vector<128xi32>
    %128 = vector.multi_reduction <add>, %127, %cst_71 [0] : vector<2x128xi32> to vector<128xi32>
    %129 = vector.shape_cast %128 : vector<128xi32> to vector<1x128xi32>
    %c1_i32_72 = arith.constant 1 : i32
    %c0_i32_73 = arith.constant 0 : i32
    %130 = vector.broadcast %c1_i32_72 : i32 to vector<2x128xi32>
    %131 = vector.broadcast %c0_i32_73 : i32 to vector<2x128xi32>
    %132 = arith.select %118, %130, %131 : vector<2x128xi1>, vector<2x128xi32>
    %cst_74 = arith.constant dense<0> : vector<128xi32>
    %133 = vector.multi_reduction <add>, %132, %cst_74 [0] : vector<2x128xi32> to vector<128xi32>
    %134 = vector.shape_cast %133 : vector<128xi32> to vector<1x128xi32>
    %c0_i32_75 = arith.constant 0 : i32
    %135 = vector.broadcast %c0_i32_75 : i32 to vector<1x128xi32>
    %c0_76 = arith.constant 0 : index
    %c0_77 = arith.constant 0 : index
    %c0_78 = arith.constant 0 : index
    %136 = vector.load %arg4[%c0_76, %c0_77, %c0_78] : memref<1x16x128xi32, #tpu.memory_space<vmem>>, vector<1x16x128xi32>
    %137 = vector.shape_cast %136 : vector<1x16x128xi32> to vector<16x128xi32>
    %138 = tpu.concatenate %44, %64, %84, %104, %124, %49, %69, %89, %109, %129, %54, %74, %94, %114, %134, %135 in 0 : vector<1x128xi32>, vector<1x128xi32>, vector<1x128xi32>, vector<1x128xi32>, vector<1x128xi32>, vector<1x128xi32>, vector<1x128xi32>, vector<1x128xi32>, vector<1x128xi32>, vector<1x128xi32>, vector<1x128xi32>, vector<1x128xi32>, vector<1x128xi32>, vector<1x128xi32>, vector<1x128xi32>, vector<1x128xi32> -> vector<16x128xi32>
    %139 = arith.addi %137, %138 : vector<16x128xi32>
    %c0_79 = arith.constant 0 : index
    %c0_80 = arith.constant 0 : index
    %c0_81 = arith.constant 0 : index
    %140 = vector.load %arg4[%c0_79, %c0_80, %c0_81] : memref<1x16x128xi32, #tpu.memory_space<vmem>>, vector<1x16x128xi32>
    %141 = vector.shape_cast %140 : vector<1x16x128xi32> to vector<16x128xi32>
    %142 = vector.shape_cast %139 : vector<16x128xi32> to vector<1x16x128xi32>
    tpu.vector_store %arg4[%c0_79, %c0_80, %c0_81], %142 {strides = array<i32>} : memref<1x16x128xi32, #tpu.memory_space<vmem>>, vector<1x16x128xi32>,
    return
  }
  func.func @transform_0(%arg0: i32, %arg1: i32) -> (i32, i32, i32, i32) {
    %c0_i32 = arith.constant 0 : i32
    %c0_i32_0 = arith.constant 0 : i32
    %c0_i32_1 = arith.constant 0 : i32
    return %arg0, %c0_i32, %arg1, %c0_i32_0 : i32, i32, i32, i32
  }
  func.func @transform_1(%arg0: i32, %arg1: i32) -> (i32, i32, i32) {
    %c0_i32 = arith.constant 0 : i32
    %c0_i32_0 = arith.constant 0 : i32
    return %arg0, %arg1, %c0_i32 : i32, i32, i32
  }
  func.func @transform_2(%arg0: i32, %arg1: i32) -> (i32, i32, i32) {
    %c0_i32 = arith.constant 0 : i32
    %c0_i32_0 = arith.constant 0 : i32
    %c0_i32_1 = arith.constant 0 : i32
    return %arg0, %c0_i32, %c0_i32_0 : i32, i32, i32
  }
}

</mosaic_0001>

<llo_original>
// kernel: tpu_custom_call.1
$region0: #{tpu_custom_call.1}
  #allocation0 [shape = 'u32[]', space=smem, size = 0x4, offset = 0x4, fixed_abs, tag = 'smem constant byte address 0x4 - core index']
  #allocation1 [shape = 'u32[72,128]{1,0:T(1,128)}', space=vmem, size = 0x9000, scoped, tag = 'internal scratch']
  %s0 = inlined_call_operand.hbm [shape: f32[2,5,2,128], index: 0, kind: input, shape index: {}]
  %s1 = inlined_call_operand.hbm [shape: s32[2,2,128], index: 1, kind: input, shape index: {}]
  %s2 = inlined_call_operand.hbm [shape: s32[2,16,128], index: 2, kind: output, shape index: {}]
  %s3 = sld [smem:[#allocation0]]
  $region53: #{tpu_custom_call.1} parent=0
    _
  %s5 = ssub.s32 1, %s3
  %s6 = scalar_select 0, %s5, %s3
  $region1: #{tpu_custom_call.1} parent=0
    #allocation2 [shape = 'u8[10240]{0}', space=vmem, size = 0x2800, scoped, tag = 'input window, operand 0']
    #allocation3 [shape = 's32[2]{0}', space=sflag, size = 0x8, scoped, tag = 'scoped memory for tpu_custom_call.1']
    #allocation4 [shape = 's32[2]{0}', space=sflag, size = 0x8, scoped, tag = 'scoped memory for tpu_custom_call.1']
    #allocation5 [shape = 'u8[2048]{0}', space=vmem, size = 0x800, scoped, tag = 'input window, operand 1']
    #allocation6 [shape = 's32[2]{0}', space=sflag, size = 0x8, scoped, tag = 'scoped memory for tpu_custom_call.1']
    #allocation7 [shape = 'u8[16384]{0}', space=vmem, size = 0x4000, scoped, tag = 'output window, operand 0']
    %7 = vsyncpa [#allocation3], 0
    %s8 = scalar_lea.sflag [#allocation3], 1
    %9 = vsyncpa %s8, 0
    %10 = vsyncpa [#allocation6], 0
    %s11 = scalar_lea.sflag [#allocation6], 1
    %12 = vsyncpa %s11, 0
    %13 = vsyncpa [#allocation4], 0
    %s14 = scalar_lea.sflag [#allocation4], 1
    %15 = vsyncpa %s14, 0
    loop: start=0, step=1, limit=4
    $region2: #{tpu_custom_call.1} parent=1 // loop_pre_header
      _
    $region3: #{tpu_custom_call.1} parent=1 // loop_header
      %s17 = sphi 0, %s21
      %p18 = scmp.ge.s32.totalorder %s17, 4
      %s24 = sphi 0, %s36
      %s25 = sphi 0, %s32
      %s26 = sphi 0, %s24
      %s27 = sphi 0, %s25
      %s28 = sphi 0, %s26
      %s29 = sphi 0, %s27
      %s41 = sphi 0, %s43
      %s44 = sphi 0, %s41
      %s45 = sphi 0, %s44
      %s61 = sphi 0, %s45
      %s69 = sphi 0, %s71
      %s72 = sphi 0, %s69
      %s73 = sphi 0, %s72
      %s89 = sphi 0, %s73
      %s95 = sphi 0, %s97
      %s98 = sphi 0, %s95
      %s99 = sphi 0, %s98
      %s115 = sphi 0, %s99
    $region4: #{tpu_custom_call.1} parent=1 // loop_header_branch
      %20 = sbr.rel (%p18) target = $region8
    $region5: #{tpu_custom_call.1} parent=1 // loop_body
      %s22 = ssub.s32 %s17, 1
      %s23 = ssub.s32 %s17, 2
      %s30 = sadd.s32 1, %s25
      %p31 = scmp.ge.s32.totalorder %s30, 1
      %s32 = scalar_select %p31, 0, %s30
      %s33 = sadd.s32 1, %s24
      %s34 = scalar_select %p31, %s33, %s24
      %p35 = scmp.ge.s32.totalorder %s34, 2
      %s36 = scalar_select %p35, 0, %s34
      %s37 = ssub.s32 %s24, %s36
      %s38 = ssub.s32 %s25, %s32
      %s39 = sor.u32 %s37, %s38
      %p40 = scmp.eq.s32.totalorder %s39, 0
      %s42 = sadd.s32 %s41, 1
      %s43 = scalar_select %p40, %s41, %s42
      %p46 = pneg %p40
      %p47 = scmp.eq.s32.totalorder %s17, 1
      %p48 = por %p46, %p47
      %p49 = scmp.ne.s32.totalorder %s41, %s44
      %p50 = scmp.eq.s32.totalorder %s17, 0
      %p51 = por %p49, %p50
      %p52 = scmp.ne.s32.totalorder %s41, %s44
      %p53 = scmp.eq.s32.totalorder %s22, 1
      %p54 = por %p52, %p53
      %p55 = scmp.ne.s32.totalorder %s44, %s45
      %p56 = scmp.eq.s32.totalorder %s22, 0
      %p57 = por %p55, %p56
      %p58 = scmp.ne.s32.totalorder %s44, %s45
      %p59 = scmp.eq.s32.totalorder %s23, 1
      %p60 = por %p58, %p59
      %p62 = scmp.ne.s32.totalorder %s45, %s61
      %p63 = scmp.eq.s32.totalorder %s23, 0
      %p64 = por %p62, %p63
      %s65 = ssub.s32 %s24, %s36
      %s66 = ssub.s32 %s25, %s32
      %s67 = sor.u32 %s65, %s66
      %p68 = scmp.eq.s32.totalorder %s67, 0
      %s70 = sadd.s32 %s69, 1
      %s71 = scalar_select %p68, %s69, %s70
      %p74 = pneg %p68
      %p75 = scmp.eq.s32.totalorder %s17, 1
      %p76 = por %p74, %p75
      %p77 = scmp.ne.s32.totalorder %s69, %s72
      %p78 = scmp.eq.s32.totalorder %s17, 0
      %p79 = por %p77, %p78
      %p80 = scmp.ne.s32.totalorder %s69, %s72
      %p81 = scmp.eq.s32.totalorder %s22, 1
      %p82 = por %p80, %p81
      %p83 = scmp.ne.s32.totalorder %s72, %s73
      %p84 = scmp.eq.s32.totalorder %s22, 0
      %p85 = por %p83, %p84
      %p86 = scmp.ne.s32.totalorder %s72, %s73
      %p87 = scmp.eq.s32.totalorder %s23, 1
      %p88 = por %p86, %p87
      %p90 = scmp.ne.s32.totalorder %s73, %s89
      %p91 = scmp.eq.s32.totalorder %s23, 0
      %p92 = por %p90, %p91
      %s93 = ssub.s32 %s24, %s36
      %p94 = scmp.eq.s32.totalorder %s93, 0
      %s96 = sadd.s32 %s95, 1
      %s97 = scalar_select %p94, %s95, %s96
      %p100 = pneg %p94
      %p101 = scmp.eq.s32.totalorder %s17, 1
      %p102 = por %p100, %p101
      %p103 = scmp.ne.s32.totalorder %s95, %s98
      %p104 = scmp.eq.s32.totalorder %s17, 0
      %p105 = por %p103, %p104
      %p106 = scmp.ne.s32.totalorder %s95, %s98
      %p107 = scmp.eq.s32.totalorder %s22, 1
      %p108 = por %p106, %p107
      %p109 = scmp.ne.s32.totalorder %s98, %s99
      %p110 = scmp.eq.s32.totalorder %s22, 0
      %p111 = por %p109, %p110
      %p112 = scmp.ne.s32.totalorder %s98, %s99
      %p113 = scmp.eq.s32.totalorder %s23, 1
      %p114 = por %p112, %p113
      %p116 = scmp.ne.s32.totalorder %s99, %s115
      %p117 = scmp.eq.s32.totalorder %s23, 0
      %p118 = por %p116, %p117
      %p119 = scmp.le.s32.totalorder 1, %s17
      %p120 = scmp.lt.s32.totalorder %s17, 3
      %p121 = pnand %p119, %p120
      %p122 = pneg %p121
      // Predicated region
      $region9: #{tpu_custom_call.1} parent=5 // pred_check
        _
      $region10: #{tpu_custom_call.1} parent=5 // pred_check_branch
        %124 = sbr.rel (%p121) target = $region12
      $region11: #{tpu_custom_call.1} parent=5 // pred_region
        %s125 = ssub.s32 %s17, 1
      $region12: #{tpu_custom_call.1} parent=5 // pred_fallthru
        _
      %p126 = scmp.lt.s32.totalorder %s17, 2
      // Predicated region
      $region13: #{tpu_custom_call.1} parent=5 // pred_check
        %p127 = pneg %p126
      $region14: #{tpu_custom_call.1} parent=5 // pred_check_branch
        %129 = sbr.rel (%p127) target = $region16
      $region15: #{tpu_custom_call.1} parent=5 // pred_region
        // Predicated region
        $region17: #{tpu_custom_call.1} parent=15 // pred_check
          %p130 = pneg %p51
        $region18: #{tpu_custom_call.1} parent=15 // pred_check_branch
          %132 = sbr.rel (%p130) target = $region20
        $region19: #{tpu_custom_call.1} parent=15 // pred_region
          %s133 = sand.u32 %s41, 1
          %s134 = scalar_lea.sflag [#allocation3], %s133
          %s135 = sand.u32 %s41, 1
          %s136 = smul.addr %s135, 10
          %s137 = scalar_lea.vmem [#allocation2], %s136
          %139 = vsyncadd %s134, 0
          %s140 = smul.addr %s24, 5
          %s141 = sadd.s32 %s25, %s140
          %s142 = smul.addr %s141, 2
          %s143 = scalar_lea.hbm %s0, %s142
          %s144 = sshll.u32 %s143, 4
          %s145 = int_to_ptr.hbm [resolvable:$true] %s144
          %s146 = sshll.u32 %s137, 4
          %s147 = int_to_ptr.vmem [resolvable:$true] %s146
          %152 = dma.hbm_to_vmem [thread:$0]  %s145, 160, %s147, %s134, 32, 32, 2
        $region20: #{tpu_custom_call.1} parent=15 // pred_fallthru
          _
        // Predicated region
        $region21: #{tpu_custom_call.1} parent=15 // pred_check
          %p153 = pneg %p79
        $region22: #{tpu_custom_call.1} parent=15 // pred_check_branch
          %155 = sbr.rel (%p153) target = $region24
        $region23: #{tpu_custom_call.1} parent=15 // pred_region
          %s156 = sand.u32 %s69, 1
          %s157 = scalar_lea.sflag [#allocation6], %s156
          %s158 = sand.u32 %s69, 1
          %s159 = smul.addr %s158, 2
          %s160 = scalar_lea.vmem [#allocation5], %s159
          %162 = vsyncadd %s157, 0
          %s163 = sadd.s32 %s25, %s24
          %s164 = smul.addr %s163, 2
          %s165 = scalar_lea.hbm %s1, %s164
          %s167 = sshll.u32 %s165, 4
          %s168 = int_to_ptr.hbm [resolvable:$true] %s167
          %s169 = sshll.u32 %s160, 4
          %s170 = int_to_ptr.vmem [resolvable:$true] %s169
          %172 = dma.hbm_to_vmem [thread:$0]  %s168, 32, %s170, %s157
        $region24: #{tpu_custom_call.1} parent=15 // pred_fallthru
          _
      $region16: #{tpu_custom_call.1} parent=5 // pred_fallthru
        _
      %p173 = scmp.le.s32.totalorder 1, %s17
      %p174 = scmp.lt.s32.totalorder %s17, 3
      %p175 = pnand %p173, %p174
      %p176 = pneg %p175
      // Predicated region
      $region25: #{tpu_custom_call.1} parent=5 // pred_check
        _
      $region26: #{tpu_custom_call.1} parent=5 // pred_check_branch
        %178 = sbr.rel (%p175) target = $region28
      $region27: #{tpu_custom_call.1} parent=5 // pred_region
        %s179 = ssub.s32 %s17, 1
        %s180 = sand.u32 %s44, 1
        %s181 = scalar_lea.sflag [#allocation3], %s180
        %s182 = sand.u32 %s44, 1
        %s183 = smul.addr %s182, 10
        %s184 = scalar_lea.vmem [#allocation2], %s183
        // Predicated region
        $region29: #{tpu_custom_call.1} parent=27 // pred_check
          %p185 = pneg %p57
        $region30: #{tpu_custom_call.1} parent=27 // pred_check_branch
          %187 = sbr.rel (%p185) target = $region32
        $region31: #{tpu_custom_call.1} parent=27 // pred_region
          %189 = dma.done %s181, 160
        $region32: #{tpu_custom_call.1} parent=27 // pred_fallthru
          _
        %s190 = sand.u32 %s72, 1
        %s191 = scalar_lea.sflag [#allocation6], %s190
        %s192 = sand.u32 %s72, 1
        %s193 = smul.addr %s192, 2
        %s194 = scalar_lea.vmem [#allocation5], %s193
        // Predicated region
        $region33: #{tpu_custom_call.1} parent=27 // pred_check
          %p195 = pneg %p85
        $region34: #{tpu_custom_call.1} parent=27 // pred_check_branch
          %197 = sbr.rel (%p195) target = $region36
        $region35: #{tpu_custom_call.1} parent=27 // pred_region
          %199 = dma.done %s191, 32
        $region36: #{tpu_custom_call.1} parent=27 // pred_fallthru
          _
        %s200 = sand.u32 %s44, 1
        %s201 = scalar_lea.sflag [#allocation3], %s200
        %s202 = sand.u32 %s44, 1
        %s203 = smul.addr %s202, 10
        %s204 = scalar_lea.vmem [#allocation2], %s203
        %p205 = pneg %p57
        %p206 = pneg %p54
        %s207 = sand.u32 %s72, 1
        %s208 = scalar_lea.sflag [#allocation6], %s207
        %s209 = sand.u32 %s72, 1
        %s210 = smul.addr %s209, 2
        %s211 = scalar_lea.vmem [#allocation5], %s210
        %p212 = pneg %p85
        %p213 = pneg %p82
        %p214 = pneg %p111
        %p215 = pneg %p108
        %s216 = sand.u32 %s98, 1
        %s217 = scalar_lea.sflag [#allocation4], %s216
        %s218 = sand.u32 %s98, 1
        %s219 = smul.addr %s218, 16
        %s220 = scalar_lea.vmem [#allocation7], %s219
        %p221 = scmp.eq.s32.totalorder %s27, 0
        // Predicated region
        $region37: #{tpu_custom_call.1} parent=27 // pred_check
          %p222 = pneg %p221
        $region38: #{tpu_custom_call.1} parent=27 // pred_check_branch
          %224 = sbr.rel (%p222) target = $region40
        $region39: #{tpu_custom_call.1} parent=27 // pred_region
          %225 = vst [vmem:[%s220] sm:$0xff] 0
          %226 = vst [vmem:[%s220 + $0x8] sm:$0xff] 0
        $region40: #{tpu_custom_call.1} parent=27 // pred_fallthru
          _
        %v227 = vld [vmem:[%s194] sm:$0x3]
        %vm228 = vcmp.ge.s32.totalorder %v227, 0
        %v229 = vld [vmem:[%s184] sm:$0x3]
        %s230 = scalar_lea.vmem %s184, 2 [#allocation2]
        %v231 = vld [vmem:[%s230] sm:$0x3]
        %vm232 = vcmp.gt.f32.partialorder %v231, %v229
        %v233 = vsel %vm232, 1, 0
        %v234 = vsel %vm232, %v231, %v229
        %s235 = scalar_lea.vmem %s184, 4 [#allocation2]
        %v236 = vld [vmem:[%s235] sm:$0x3]
        %vm237 = vcmp.gt.f32.partialorder %v236, %v234
        %v238 = vsel %vm237, 2, %v233
        %v239 = vsel %vm237, %v236, %v234
        %s240 = scalar_lea.vmem %s184, 6 [#allocation2]
        %v241 = vld [vmem:[%s240] sm:$0x3]
        %vm242 = vcmp.gt.f32.partialorder %v241, %v239
        %v243 = vsel %vm242, 3, %v238
        %v244 = vsel %vm242, %v241, %v239
        %s245 = scalar_lea.vmem %s184, 8 [#allocation2]
        %v246 = vld [vmem:[%s245] sm:$0x3]
        %vm247 = vcmp.gt.f32.partialorder %v246, %v244
        %v248 = vsel %vm247, 4, %v243
        %v249 = vsel %vm228, %v248, 4294967295
        %vm250 = vcmp.eq.s32.totalorder %v249, 0
        %vm251 = vcmp.eq.s32.totalorder %v227, 0
        %vm252 = vmand %vm250, %vm251
        %v253 = vsel %vm252, 1, 0
        %vm254 = vcmask 1041408
        %v255 = vsel %vm254, %v253, 0
        %v256 = vrot.slane %v255, 4
        %v257 = vadd.s32 %v255, %v256
        %v258 = vrot.slane %v257, 2
        %v259 = vadd.s32 %v257, %v258
        %v260 = vrot.slane %v259, 1
        %v261 = vadd.s32 %v259, %v260
        %v262 = vsel %vm250, 1, 0
        %v263 = vsel %vm254, %v262, 0
        %v264 = vrot.slane %v263, 4
        %v265 = vadd.s32 %v263, %v264
        %v266 = vrot.slane %v265, 2
        %v267 = vadd.s32 %v265, %v266
        %v268 = vrot.slane %v267, 1
        %v269 = vadd.s32 %v267, %v268
        %v270 = vsel %vm251, 1, 0
        %v271 = vsel %vm254, %v270, 0
        %v272 = vrot.slane %v271, 4
        %v273 = vadd.s32 %v271, %v272
        %v274 = vrot.slane %v273, 2
        %v275 = vadd.s32 %v273, %v274
        %v276 = vrot.slane %v275, 1
        %v277 = vadd.s32 %v275, %v276
        %vm278 = vcmp.eq.s32.totalorder %v249, 1
        %vm279 = vcmp.eq.s32.totalorder %v227, 1
        %vm280 = vmand %vm278, %vm279
        %v281 = vsel %vm280, 1, 0
        %v282 = vsel %vm254, %v281, 0
        %v283 = vrot.slane %v282, 4
        %v284 = vadd.s32 %v282, %v283
        %v285 = vrot.slane %v284, 2
        %v286 = vadd.s32 %v284, %v285
        %v287 = vrot.slane %v286, 1
        %v288 = vadd.s32 %v286, %v287
        %v289 = vsel %vm278, 1, 0
        %v290 = vsel %vm254, %v289, 0
        %v291 = vrot.slane %v290, 4
        %v292 = vadd.s32 %v290, %v291
        %v293 = vrot.slane %v292, 2
        %v294 = vadd.s32 %v292, %v293
        %v295 = vrot.slane %v294, 1
        %v296 = vadd.s32 %v294, %v295
        %v297 = vsel %vm279, 1, 0
        %v298 = vsel %vm254, %v297, 0
        %v299 = vrot.slane %v298, 4
        %v300 = vadd.s32 %v298, %v299
        %v301 = vrot.slane %v300, 2
        %v302 = vadd.s32 %v300, %v301
        %v303 = vrot.slane %v302, 1
        %v304 = vadd.s32 %v302, %v303
        %vm305 = vcmp.eq.s32.totalorder %v249, 2
        %vm306 = vcmp.eq.s32.totalorder %v227, 2
        %vm307 = vmand %vm305, %vm306
        %v308 = vsel %vm307, 1, 0
        %v309 = vsel %vm254, %v308, 0
        %v310 = vrot.slane %v309, 4
        %v311 = vadd.s32 %v309, %v310
        %v312 = vrot.slane %v311, 2
        %v313 = vadd.s32 %v311, %v312
        %v314 = vrot.slane %v313, 1
        %v315 = vadd.s32 %v313, %v314
        %v316 = vsel %vm305, 1, 0
        %v317 = vsel %vm254, %v316, 0
        %v318 = vrot.slane %v317, 4
        %v319 = vadd.s32 %v317, %v318
        %v320 = vrot.slane %v319, 2
        %v321 = vadd.s32 %v319, %v320
        %v322 = vrot.slane %v321, 1
        %v323 = vadd.s32 %v321, %v322
        %v324 = vsel %vm306, 1, 0
        %v325 = vsel %vm254, %v324, 0
        %v326 = vrot.slane %v325, 4
        %v327 = vadd.s32 %v325, %v326
        %v328 = vrot.slane %v327, 2
        %v329 = vadd.s32 %v327, %v328
        %v330 = vrot.slane %v329, 1
        %v331 = vadd.s32 %v329, %v330
        %vm332 = vcmp.eq.s32.totalorder %v249, 3
        %vm333 = vcmp.eq.s32.totalorder %v227, 3
        %vm334 = vmand %vm332, %vm333
        %v335 = vsel %vm334, 1, 0
        %v336 = vsel %vm254, %v335, 0
        %v337 = vrot.slane %v336, 4
        %v338 = vadd.s32 %v336, %v337
        %v339 = vrot.slane %v338, 2
        %v340 = vadd.s32 %v338, %v339
        %v341 = vrot.slane %v340, 1
        %v342 = vadd.s32 %v340, %v341
        %v343 = vsel %vm332, 1, 0
        %v344 = vsel %vm254, %v343, 0
        %v345 = vrot.slane %v344, 4
        %v346 = vadd.s32 %v344, %v345
        %v347 = vrot.slane %v346, 2
        %v348 = vadd.s32 %v346, %v347
        %v349 = vrot.slane %v348, 1
        %v350 = vadd.s32 %v348, %v349
        %v351 = vsel %vm333, 1, 0
        %v352 = vsel %vm254, %v351, 0
        %v353 = vrot.slane %v352, 4
        %v354 = vadd.s32 %v352, %v353
        %v355 = vrot.slane %v354, 2
        %v356 = vadd.s32 %v354, %v355
        %v357 = vrot.slane %v356, 1
        %v358 = vadd.s32 %v356, %v357
        %vm359 = vcmp.eq.s32.totalorder %v249, 4
        %vm360 = vcmp.eq.s32.totalorder %v227, 4
        %vm361 = vmand %vm359, %vm360
        %v362 = vsel %vm361, 1, 0
        %v363 = vsel %vm254, %v362, 0
        %v364 = vrot.slane %v363, 4
        %v365 = vadd.s32 %v363, %v364
        %v366 = vrot.slane %v365, 2
        %v367 = vadd.s32 %v365, %v366
        %v368 = vrot.slane %v367, 1
        %v369 = vadd.s32 %v367, %v368
        %v370 = vsel %vm359, 1, 0
        %v371 = vsel %vm254, %v370, 0
        %v372 = vrot.slane %v371, 4
        %v373 = vadd.s32 %v371, %v372
        %v374 = vrot.slane %v373, 2
        %v375 = vadd.s32 %v373, %v374
        %v376 = vrot.slane %v375, 1
        %v377 = vadd.s32 %v375, %v376
        %v378 = vsel %vm360, 1, 0
        %v379 = vsel %vm254, %v378, 0
        %v380 = vrot.slane %v379, 4
        %v381 = vadd.s32 %v379, %v380
        %v382 = vrot.slane %v381, 2
        %v383 = vadd.s32 %v381, %v382
        %v384 = vrot.slane %v383, 1
        %v385 = vadd.s32 %v383, %v384
        %v386 = vld [vmem:[%s220] sm:$0xff]
        %v387 = vld [vmem:[%s220 + $0x8] sm:$0xff]
        %vm388 = vcmask 1040384
        %v389 = vsel %vm388, %v261, %v288
        %v390 = vsel %vm254, %v389, %v315
        %vm391 = vcmask 1042432
        %v392 = vsel %vm391, %v390, %v342
        %vm393 = vcmask 1043456
        %v394 = vsel %vm393, %v392, %v369
        %vm395 = vcmask 1044480
        %v396 = vsel %vm395, %v394, %v269
        %vm397 = vcmask 1045504
        %v398 = vsel %vm397, %v396, %v296
        %vm399 = vcmask 1046528
        %v400 = vsel %vm399, %v398, %v323
        %v401 = vsel %vm388, %v350, %v377
        %v402 = vsel %vm254, %v401, %v277
        %v403 = vsel %vm391, %v402, %v304
        %v404 = vsel %vm393, %v403, %v331
        %v405 = vsel %vm395, %v404, %v358
        %v406 = vsel %vm397, %v405, %v385
        %v407 = vsel %vm399, %v406, 0
        %v408 = vadd.s32 %v386, %v400
        %v409 = vadd.s32 %v387, %v407
        %410 = vst [vmem:[%s220] sm:$0xff] %v408
        %411 = vst [vmem:[%s220 + $0x8] sm:$0xff] %v409
        %s412 = sand.u32 %s98, 1
        %s413 = scalar_lea.sflag [#allocation4], %s412
        %s414 = sand.u32 %s98, 1
        %s415 = smul.addr %s414, 16
        %s416 = scalar_lea.vmem [#allocation7], %s415
        // Predicated region
        $region41: #{tpu_custom_call.1} parent=27 // pred_check
          %p417 = pneg %p108
        $region42: #{tpu_custom_call.1} parent=27 // pred_check_branch
          %419 = sbr.rel (%p417) target = $region44
        $region43: #{tpu_custom_call.1} parent=27 // pred_region
          %421 = vsyncadd %s413, 0
          %s422 = smul.addr %s26, 2
          %s423 = smul.addr %s422, 8
          %s424 = scalar_lea.hbm %s2, %s423
          %s425 = sshll.u32 %s416, 4
          %s426 = int_to_ptr.vmem [resolvable:$true] %s425
          %s427 = sshll.u32 %s424, 4
          %s428 = int_to_ptr.hbm [resolvable:$true] %s427
          %433 = dma.vmem_to_hbm [thread:$0]  %s426, 256, %s428, %s413, 128, 128, 8
        $region44: #{tpu_custom_call.1} parent=27 // pred_fallthru
          _
      $region28: #{tpu_custom_call.1} parent=5 // pred_fallthru
        _
      %p434 = scmp.le.s32.totalorder 2, %s17
      // Predicated region
      $region45: #{tpu_custom_call.1} parent=5 // pred_check
        %p435 = pneg %p434
      $region46: #{tpu_custom_call.1} parent=5 // pred_check_branch
        %437 = sbr.rel (%p435) target = $region48
      $region47: #{tpu_custom_call.1} parent=5 // pred_region
        %s438 = ssub.s32 %s17, 2
        // Predicated region
        $region49: #{tpu_custom_call.1} parent=47 // pred_check
          %p439 = pneg %p114
        $region50: #{tpu_custom_call.1} parent=47 // pred_check_branch
          %441 = sbr.rel (%p439) target = $region52
        $region51: #{tpu_custom_call.1} parent=47 // pred_region
          %s442 = sand.u32 %s99, 1
          %s443 = scalar_lea.sflag [#allocation4], %s442
          %s444 = sand.u32 %s99, 1
          %s445 = smul.addr %s444, 16
          %s446 = scalar_lea.vmem [#allocation7], %s445
          %448 = dma.done %s443, 256
        $region52: #{tpu_custom_call.1} parent=47 // pred_fallthru
          _
      $region48: #{tpu_custom_call.1} parent=5 // pred_fallthru
        _
    $region6: #{tpu_custom_call.1} parent=1 // loop_footer
      %s21 = sadd.s32 1, %s17
    $region7: #{tpu_custom_call.1} parent=1 // loop_footer_branch
      %16 = sbr.rel target = $region3
    $region8: #{tpu_custom_call.1} parent=1 // loop_exit
      _
    %449 = vsyncpa [#allocation3], 1
    %s450 = scalar_lea.sflag [#allocation3], 1
    %451 = vsyncpa %s450, 1
    %452 = vsyncpa [#allocation6], 1
    %s453 = scalar_lea.sflag [#allocation6], 1
    %454 = vsyncpa %s453, 1
    %455 = vsyncpa [#allocation4], 1
    %s456 = scalar_lea.sflag [#allocation4], 1
    %457 = vsyncpa %s456, 1

</llo_original>
